<compile_context>
chip_gen: v6e
topology: v6e:2x2x1
jax: 0.10.0
libtpu: 0.0.40
codegen_flags: <defaults>
</compile_context>

<pallas_src>
import jax
import jax.numpy as jnp
from jax import lax
from jax.experimental import pallas as pl
from jax.experimental.pallas import tpu as pltpu

LANES = 128
SUBLANES = 8
MAX_BLOCK_BYTES = 2 * 1024 * 1024   # per-input VMEM block target (2 MiB)
CHUNK_ROWS_MAX = 512                # in-kernel accumulation chunk (256 KiB f32)

# Scheduler configuration ("module init"), evaluated deterministically.
INITIAL_SMOOTHING = 0.2
FINAL_SMOOTHING = 0.05
DECAY_EPOCHS = 50


def _cdiv(a, b):
    return (a + b - 1) // b


def _round_up(a, b):
    return _cdiv(a, b) * b


def _scheduled_smoothing(epoch,
                         initial_smoothing=INITIAL_SMOOTHING,
                         final_smoothing=FINAL_SMOOTHING,
                         decay_epochs=DECAY_EPOCHS):
    """Host-side replica of AdaptiveLossScheduler.set_epoch()."""
    if epoch < decay_epochs:
        progress = epoch / decay_epochs
        return initial_smoothing * (1.0 - progress) + final_smoothing * progress
    return final_smoothing


def _is_v7x():
    """True only on dual-TensorCore chips (v7x); v5e/v6e are single-TC."""
    try:
        kind = jax.devices()[0].device_kind.lower()
    except Exception:
        return False
    return "7" in kind


def _make_kernel(steps, block_rows, chunk_rows, total_rows):
    """Per-lane partial sums of (p-t)^2 and |p-t| for one (block_rows,128) block."""
    n_chunks = block_rows // chunk_rows
    groups = chunk_rows // SUBLANES

    def kernel(pred_ref, tgt_ref, sq_ref, abs_ref):
        shard = pl.program_id(0)
        j = pl.program_id(1)

        @pl.when(j == 0)
        def _():
            sq_ref[...] = jnp.zeros_like(sq_ref)
            abs_ref[...] = jnp.zeros_like(abs_ref)

        # Un-clamped global base row of this grid step (the input index_map may
        # clamp; the mask below uses this value so clamped/surplus steps
        # contribute exactly zero).
        base_row = (shard * steps + j) * block_rows

        def chunk_diff(c):
            r = pl.multiple_of(c * chunk_rows, chunk_rows)
            p = pred_ref[pl.ds(r, chunk_rows), :].astype(jnp.float32)
            t = tgt_ref[pl.ds(r, chunk_rows), :].astype(jnp.float32)
            return r, p - t

        def accumulate(d, carry):
            sq, ab = carry
            # (chunk_rows,128) -> (groups,8,128): pure sublane relabel; the
            # axis-0 sum is a short chain of vreg adds on the VPU.
            sq = sq + jnp.sum((d * d).reshape(groups, SUBLANES, LANES), axis=0)
            ab = ab + jnp.sum(jnp.abs(d).reshape(groups, SUBLANES, LANES), axis=0)
            return sq, ab

        zeros = jnp.zeros((SUBLANES, LANES), jnp.float32)
        block_is_full = base_row + block_rows <= total_rows

        @pl.when(block_is_full)
        def _():  # fast path: no masking for interior blocks
            def body(c, carry):
                _, d = chunk_diff(c)
                return accumulate(d, carry)
            sq, ab = lax.fori_loop(0, n_chunks, body, (zeros, zeros), unroll=True)
            sq_ref[...] += sq
            abs_ref[...] += ab

        @pl.when(jnp.logical_not(block_is_full))
        def _():  # ragged tail / surplus step: mask rows past the real data
            row_iota = lax.broadcasted_iota(jnp.int32, (chunk_rows, LANES), 0)

            def body(c, carry):
                r, d = chunk_diff(c)
                valid = (base_row + r + row_iota) < total_rows
                return accumulate(jnp.where(valid, d, 0.0), carry)

            sq, ab = lax.fori_loop(0, n_chunks, body, (zeros, zeros), unroll=True)
            sq_ref[...] += sq
            abs_ref[...] += ab

    return kernel


def adaptive_scheduled_loss(pred, target, epoch=0):
    """Forward pass of AdaptiveLossScheduler (concrete smoothed base loss).

    pred, target: arrays of identical shape (e.g. NCHW).  Returns scalar f32.
    """
    assert pred.shape == target.shape
    numel = int(pred.size)

    smoothing = _scheduled_smoothing(epoch)
    confidence = 1.0 - smoothing

    itemsize = jnp.dtype(pred.dtype).itemsize
    sub_granule = SUBLANES * max(1, 4 // itemsize)       # 8 (f32) / 16 (bf16)
    max_block_rows = max(sub_granule, MAX_BLOCK_BYTES // (LANES * itemsize))

    # Flatten to a lane-dense slab.  No full-array padding: the ragged tail is
    # masked in the kernel.  Only when numel isn't a multiple of 128 do we pad
    # by <=127 zeros (exact: padded diff == 0 contributes nothing).
    pred_flat = pred.reshape(-1)
    tgt_flat = target.reshape(-1)
    if numel % LANES != 0:
        # TODO(synk): this rare lane-tail still costs one small pad copy.
        pad = LANES - numel % LANES
        pred_flat = jnp.pad(pred_flat, (0, pad))
        tgt_flat = jnp.pad(tgt_flat, (0, pad))
    total_rows = pred_flat.size // LANES
    pred2d = pred_flat.reshape(total_rows, LANES)
    tgt2d = tgt_flat.reshape(total_rows, LANES)

    # Chunk / block geometry (block_rows is always a multiple of chunk_rows,
    # chunk_rows a multiple of the dtype sublane granule).
    chunk_rows = min(CHUNK_ROWS_MAX, _round_up(total_rows, sub_granule))
    block_rows = min(max_block_rows, _round_up(total_rows, chunk_rows))
    nblocks = _cdiv(total_rows, block_rows)

    is_v7x = _is_v7x()
    shards = min(2 if is_v7x else 1, nblocks)            # 2 TCs only on v7x
    steps = _cdiv(nblocks, shards)

    if shards > 1:
        dim_sems = (getattr(pltpu, "CORE_PARALLEL", pltpu.PARALLEL), pltpu.ARBITRARY)
        pipeline_mode = pl.Buffered(3)                   # deeper buffering on v7x
    else:
        dim_sems = ("arbitrary", "arbitrary")
        pipeline_mode = None

    # Uneven shard/step split handled via a clamped index_map (no array
    # rounding); the kernel's un-clamped base_row mask zeroes surplus steps.
    if shards * steps == nblocks:
        in_map = lambda i, j: (i * steps + j, 0)
    else:
        last_block = nblocks - 1
        in_map = lambda i, j: (jnp.minimum(i * steps + j, last_block), 0)
    out_map = lambda i, j: (i, 0, 0)

    if pipeline_mode is not None:
        in_spec = pl.BlockSpec((block_rows, LANES), in_map, pipeline_mode=pipeline_mode)
    else:
        in_spec = pl.BlockSpec((block_rows, LANES), in_map)

    kernel = _make_kernel(steps, block_rows, chunk_rows, total_rows)

    cost = pl.CostEstimate(
        flops=5 * numel,
        transcendentals=0,
        bytes_accessed=2 * numel * itemsize + 2 * shards * SUBLANES * LANES * 4)

    sq_part, abs_part = pl.pallas_call(
        kernel,
        out_shape=(
            jax.ShapeDtypeStruct((shards, SUBLANES, LANES), jnp.float32),
            jax.ShapeDtypeStruct((shards, SUBLANES, LANES), jnp.float32),
        ),
        grid_spec=pltpu.PrefetchScalarGridSpec(
            num_scalar_prefetch=0,
            grid=(shards, steps),
            in_specs=[in_spec, in_spec],
            out_specs=[
                pl.BlockSpec((None, SUBLANES, LANES), out_map),
                pl.BlockSpec((None, SUBLANES, LANES), out_map),
            ],
        ),
        compiler_params=pltpu.CompilerParams(dimension_semantics=dim_sems),
        cost_estimate=cost,
    )(pred2d, tgt2d)

    # Final (tiny) cross-lane/shard reduction + scheduler weighting in JAX.
    inv_n = 1.0 / numel
    mse = jnp.sum(sq_part) * inv_n
    mae = jnp.sum(abs_part) * inv_n
    return jnp.float32(confidence) * mse + jnp.float32(smoothing) * mae


def _reference(pred, target, epoch=0):
    smoothing = _scheduled_smoothing(epoch)
    d = pred.astype(jnp.float32) - target.astype(jnp.float32)
    return (1.0 - smoothing) * jnp.mean(d * d) + smoothing * jnp.mean(jnp.abs(d))


if __name__ == "__main__":
    key = jax.random.PRNGKey(0)
    k1, k2, k3, k4 = jax.random.split(key, 4)

    # NCHW, small: batch=2, channels=4, spatial=16x16 -> numel = 2048
    shape = (2, 4, 16, 16)
    pred = jax.random.normal(k1, shape, dtype=jnp.float32)
    target = jax.random.normal(k2, shape, dtype=jnp.float32)
    epoch = 0  # scheduler state: smoothing = 0.2, confidence = 0.8
    loss = jax.block_until_ready(adaptive_scheduled_loss(pred, target, epoch))
    ref = _reference(pred, target, epoch)
    assert jnp.allclose(loss, ref, rtol=1e-5, atol=1e-5), (loss, ref)

    # Ragged shape (numel = 1365, not lane/block aligned): exercises the
    # in-kernel masked-tail path and a later scheduler epoch.
    shape2 = (3, 5, 7, 13)
    pred2 = jax.random.normal(k3, shape2, dtype=jnp.float32)
    target2 = jax.random.normal(k4, shape2, dtype=jnp.float32)
    loss2 = jax.block_until_ready(adaptive_scheduled_loss(pred2, target2, epoch=7))
    ref2 = _reference(pred2, target2, epoch=7)
    assert jnp.allclose(loss2, ref2, rtol=1e-5, atol=1e-5), (loss2, ref2)

    print("KERNEL_OK")
</pallas_src>

<mosaic_0001>
module attributes {stable_mosaic.version = 11 : i64} {
  func.func @kernel(%arg0: i32, %arg1: i32, %arg2: memref<16x128xf32, #tpu.memory_space<vmem>>, %arg3: memref<16x128xf32, #tpu.memory_space<vmem>>, %arg4: memref<1x8x128xf32, #tpu.memory_space<vmem>>, %arg5: memref<1x8x128xf32, #tpu.memory_space<vmem>>) attributes {dimension_semantics = [#tpu.dimension_semantics<arbitrary>, #tpu.dimension_semantics<arbitrary>], iteration_bounds = array<i64: 1, 1>, scalar_prefetch = 0 : i64, scratch_operands = 0 : i64, tpu.core_type = #tpu.core_type<tc>, window_params = [{transform_indices = @transform_0, window_bounds = array<i64: 16, 128>}, {transform_indices = @transform_1, window_bounds = array<i64: 16, 128>}, {transform_indices = @transform_2, window_bounds = array<i64: 1, 8, 128>}, {transform_indices = @transform_3, window_bounds = array<i64: 1, 8, 128>}]} {
    %c0_i32 = arith.constant 0 : i32
    %0 = arith.cmpi eq, %arg1, %c0_i32 : i32
    %1 = arith.extui %0 : i1 to i32
    %c0_i32_0 = arith.constant 0 : i32
    %2 = arith.cmpi ne, %1, %c0_i32_0 : i32
    scf.if %2 {
      %cst_5 = arith.constant 0.000000e+00 : f32
      %14 = vector.broadcast %cst_5 : f32 to vector<8x128xf32>
      %c0 = arith.constant 0 : index
      %c0_6 = arith.constant 0 : index
      %c0_7 = arith.constant 0 : index
      %15 = vector.load %arg4[%c0, %c0_6, %c0_7] : memref<1x8x128xf32, #tpu.memory_space<vmem>>, vector<1x8x128xf32>
      %16 = vector.shape_cast %15 : vector<1x8x128xf32> to vector<8x128xf32>
      %17 = vector.shape_cast %14 : vector<8x128xf32> to vector<1x8x128xf32>
      tpu.vector_store %arg4[%c0, %c0_6, %c0_7], %17 {strides = array<i32>} : memref<1x8x128xf32, #tpu.memory_space<vmem>>, vector<1x8x128xf32>,
      %cst_8 = arith.constant 0.000000e+00 : f32
      %18 = vector.broadcast %cst_8 : f32 to vector<8x128xf32>
      %c0_9 = arith.constant 0 : index
      %c0_10 = arith.constant 0 : index
      %c0_11 = arith.constant 0 : index
      %19 = vector.load %arg5[%c0_9, %c0_10, %c0_11] : memref<1x8x128xf32, #tpu.memory_space<vmem>>, vector<1x8x128xf32>
      %20 = vector.shape_cast %19 : vector<1x8x128xf32> to vector<8x128xf32>
      %21 = vector.shape_cast %18 : vector<8x128xf32> to vector<1x8x128xf32>
      tpu.vector_store %arg5[%c0_9, %c0_10, %c0_11], %21 {strides = array<i32>} : memref<1x8x128xf32, #tpu.memory_space<vmem>>, vector<1x8x128xf32>,
    } else {
    }
    %c1_i32 = arith.constant 1 : i32
    %3 = arith.muli %arg0, %c1_i32 : i32
    %4 = arith.addi %3, %arg1 : i32
    %c16_i32 = arith.constant 16 : i32
    %5 = arith.muli %4, %c16_i32 : i32
    %cst = arith.constant 0.000000e+00 : f32
    %6 = vector.broadcast %cst : f32 to vector<8x128xf32>
    %c16_i32_1 = arith.constant 16 : i32
    %7 = arith.addi %5, %c16_i32_1 : i32
    %c16_i32_2 = arith.constant 16 : i32
    %8 = arith.cmpi sle, %7, %c16_i32_2 : i32
    %9 = arith.extui %8 : i1 to i32
    %c0_i32_3 = arith.constant 0 : i32
    %10 = arith.cmpi ne, %9, %c0_i32_3 : i32
    scf.if %10 {
      %c0_i32_5 = arith.constant 0 : i32
      %c16_i32_6 = arith.constant 16 : i32
      %14 = arith.muli %c0_i32_5, %c16_i32_6 : i32
      %15 = tpu.assume_multiple %14, 16 : i32
      %16 = arith.index_cast %15 : i32 to index
      %c0 = arith.constant 0 : index
      %17 = vector.load %arg2[%16, %c0] : memref<16x128xf32, #tpu.memory_space<vmem>>, vector<16x128xf32>
      %18 = arith.index_cast %15 : i32 to index
      %c0_7 = arith.constant 0 : index
      %19 = vector.load %arg3[%18, %c0_7] : memref<16x128xf32, #tpu.memory_space<vmem>>, vector<16x128xf32>
      %20 = arith.subf %17, %19 : vector<16x128xf32>
      %21 = arith.mulf %20, %20 : vector<16x128xf32>
      %22 = vector.shape_cast %21 : vector<16x128xf32> to vector<2x8x128xf32>
      %cst_8 = arith.constant dense<0.000000e+00> : vector<8x128xf32>
      %23 = vector.multi_reduction <add>, %22, %cst_8 [0] : vector<2x8x128xf32> to vector<8x128xf32>
      %24 = arith.addf %6, %23 : vector<8x128xf32>
      %25 = math.absf %20 : vector<16x128xf32>
      %26 = vector.shape_cast %25 : vector<16x128xf32> to vector<2x8x128xf32>
      %cst_9 = arith.constant dense<0.000000e+00> : vector<8x128xf32>
      %27 = vector.multi_reduction <add>, %26, %cst_9 [0] : vector<2x8x128xf32> to vector<8x128xf32>
      %28 = arith.addf %6, %27 : vector<8x128xf32>
      %c1_i32_10 = arith.constant 1 : i32
      %c0_11 = arith.constant 0 : index
      %c0_12 = arith.constant 0 : index
      %c0_13 = arith.constant 0 : index
      %29 = vector.load %arg4[%c0_11, %c0_12, %c0_13] : memref<1x8x128xf32, #tpu.memory_space<vmem>>, vector<1x8x128xf32>
      %30 = vector.shape_cast %29 : vector<1x8x128xf32> to vector<8x128xf32>
      %31 = arith.addf %30, %24 : vector<8x128xf32>
      %c0_14 = arith.constant 0 : index
      %c0_15 = arith.constant 0 : index
      %c0_16 = arith.constant 0 : index
      %32 = vector.load %arg4[%c0_14, %c0_15, %c0_16] : memref<1x8x128xf32, #tpu.memory_space<vmem>>, vector<1x8x128xf32>
      %33 = vector.shape_cast %32 : vector<1x8x128xf32> to vector<8x128xf32>
      %34 = vector.shape_cast %31 : vector<8x128xf32> to vector<1x8x128xf32>
      tpu.vector_store %arg4[%c0_14, %c0_15, %c0_16], %34 {strides = array<i32>} : memref<1x8x128xf32, #tpu.memory_space<vmem>>, vector<1x8x128xf32>,
      %c0_17 = arith.constant 0 : index
      %c0_18 = arith.constant 0 : index
      %c0_19 = arith.constant 0 : index
      %35 = vector.load %arg5[%c0_17, %c0_18, %c0_19] : memref<1x8x128xf32, #tpu.memory_space<vmem>>, vector<1x8x128xf32>
      %36 = vector.shape_cast %35 : vector<1x8x128xf32> to vector<8x128xf32>
      %37 = arith.addf %36, %28 : vector<8x128xf32>
      %c0_20 = arith.constant 0 : index
      %c0_21 = arith.constant 0 : index
      %c0_22 = arith.constant 0 : index
      %38 = vector.load %arg5[%c0_20, %c0_21, %c0_22] : memref<1x8x128xf32, #tpu.memory_space<vmem>>, vector<1x8x128xf32>
      %39 = vector.shape_cast %38 : vector<1x8x128xf32> to vector<8x128xf32>
      %40 = vector.shape_cast %37 : vector<8x128xf32> to vector<1x8x128xf32>
      tpu.vector_store %arg5[%c0_20, %c0_21, %c0_22], %40 {strides = array<i32>} : memref<1x8x128xf32, #tpu.memory_space<vmem>>, vector<1x8x128xf32>,
    } else {
    }
    %true = arith.constant true
    %11 = arith.xori %8, %true : i1
    %12 = arith.extui %11 : i1 to i32
    %c0_i32_4 = arith.constant 0 : i32
    %13 = arith.cmpi ne, %12, %c0_i32_4 : i32
    scf.if %13 {
      %14 = tpu.iota {dimensions = array<i32: 0>} : vector<16x128xi32>
      %c0_i32_5 = arith.constant 0 : i32
      %c16_i32_6 = arith.constant 16 : i32
      %15 = arith.muli %c0_i32_5, %c16_i32_6 : i32
      %16 = tpu.assume_multiple %15, 16 : i32
      %17 = arith.index_cast %16 : i32 to index
      %c0 = arith.constant 0 : index
      %18 = vector.load %arg2[%17, %c0] : memref<16x128xf32, #tpu.memory_space<vmem>>, vector<16x128xf32>
      %19 = arith.index_cast %16 : i32 to index
      %c0_7 = arith.constant 0 : index
      %20 = vector.load %arg3[%19, %c0_7] : memref<16x128xf32, #tpu.memory_space<vmem>>, vector<16x128xf32>
      %21 = arith.subf %18, %20 : vector<16x128xf32>
      %22 = arith.addi %5, %16 : i32
      %23 = vector.broadcast %22 : i32 to vector<16x128xi32>
      %24 = arith.addi %23, %14 : vector<16x128xi32>
      %c16_i32_8 = arith.constant 16 : i32
      %25 = vector.broadcast %c16_i32_8 : i32 to vector<16x128xi32>
      %26 = arith.cmpi slt, %24, %25 : vector<16x128xi32>
      %cst_9 = arith.constant 0.000000e+00 : f32
      %27 = vector.broadcast %cst_9 : f32 to vector<16x128xf32>
      %28 = arith.select %26, %21, %27 : vector<16x128xi1>, vector<16x128xf32>
      %29 = arith.mulf %28, %28 : vector<16x128xf32>
      %30 = vector.shape_cast %29 : vector<16x128xf32> to vector<2x8x128xf32>
      %cst_10 = arith.constant dense<0.000000e+00> : vector<8x128xf32>
      %31 = vector.multi_reduction <add>, %30, %cst_10 [0] : vector<2x8x128xf32> to vector<8x128xf32>
      %32 = arith.addf %6, %31 : vector<8x128xf32>
      %33 = math.absf %28 : vector<16x128xf32>
      %34 = vector.shape_cast %33 : vector<16x128xf32> to vector<2x8x128xf32>
      %cst_11 = arith.constant dense<0.000000e+00> : vector<8x128xf32>
      %35 = vector.multi_reduction <add>, %34, %cst_11 [0] : vector<2x8x128xf32> to vector<8x128xf32>
      %36 = arith.addf %6, %35 : vector<8x128xf32>
      %c1_i32_12 = arith.constant 1 : i32
      %c0_13 = arith.constant 0 : index
      %c0_14 = arith.constant 0 : index
      %c0_15 = arith.constant 0 : index
      %37 = vector.load %arg4[%c0_13, %c0_14, %c0_15] : memref<1x8x128xf32, #tpu.memory_space<vmem>>, vector<1x8x128xf32>
      %38 = vector.shape_cast %37 : vector<1x8x128xf32> to vector<8x128xf32>
      %39 = arith.addf %38, %32 : vector<8x128xf32>
      %c0_16 = arith.constant 0 : index
      %c0_17 = arith.constant 0 : index
      %c0_18 = arith.constant 0 : index
      %40 = vector.load %arg4[%c0_16, %c0_17, %c0_18] : memref<1x8x128xf32, #tpu.memory_space<vmem>>, vector<1x8x128xf32>
      %41 = vector.shape_cast %40 : vector<1x8x128xf32> to vector<8x128xf32>
      %42 = vector.shape_cast %39 : vector<8x128xf32> to vector<1x8x128xf32>
      tpu.vector_store %arg4[%c0_16, %c0_17, %c0_18], %42 {strides = array<i32>} : memref<1x8x128xf32, #tpu.memory_space<vmem>>, vector<1x8x128xf32>,
      %c0_19 = arith.constant 0 : index
      %c0_20 = arith.constant 0 : index
      %c0_21 = arith.constant 0 : index
      %43 = vector.load %arg5[%c0_19, %c0_20, %c0_21] : memref<1x8x128xf32, #tpu.memory_space<vmem>>, vector<1x8x128xf32>
      %44 = vector.shape_cast %43 : vector<1x8x128xf32> to vector<8x128xf32>
      %45 = arith.addf %44, %36 : vector<8x128xf32>
      %c0_22 = arith.constant 0 : index
      %c0_23 = arith.constant 0 : index
      %c0_24 = arith.constant 0 : index
      %46 = vector.load %arg5[%c0_22, %c0_23, %c0_24] : memref<1x8x128xf32, #tpu.memory_space<vmem>>, vector<1x8x128xf32>
      %47 = vector.shape_cast %46 : vector<1x8x128xf32> to vector<8x128xf32>
      %48 = vector.shape_cast %45 : vector<8x128xf32> to vector<1x8x128xf32>
      tpu.vector_store %arg5[%c0_22, %c0_23, %c0_24], %48 {strides = array<i32>} : memref<1x8x128xf32, #tpu.memory_space<vmem>>, vector<1x8x128xf32>,
    } else {
    }
    return
  }
  func.func @transform_0(%arg0: i32, %arg1: i32) -> (i32, i32) {
    %c1_i32 = arith.constant 1 : i32
    %0 = arith.muli %arg0, %c1_i32 : i32
    %1 = arith.addi %0, %arg1 : i32
    %c0_i32 = arith.constant 0 : i32
    %c0_i32_0 = arith.constant 0 : i32
    return %1, %c0_i32 : i32, i32
  }
  func.func @transform_1(%arg0: i32, %arg1: i32) -> (i32, i32) {
    %c1_i32 = arith.constant 1 : i32
    %0 = arith.muli %arg0, %c1_i32 : i32
    %1 = arith.addi %0, %arg1 : i32
    %c0_i32 = arith.constant 0 : i32
    %c0_i32_0 = arith.constant 0 : i32
    return %1, %c0_i32 : i32, i32
  }
  func.func @transform_2(%arg0: i32, %arg1: i32) -> (i32, i32, i32) {
    %c0_i32 = arith.constant 0 : i32
    %c0_i32_0 = arith.constant 0 : i32
    %c0_i32_1 = arith.constant 0 : i32
    return %arg0, %c0_i32, %c0_i32_0 : i32, i32, i32
  }
  func.func @transform_3(%arg0: i32, %arg1: i32) -> (i32, i32, i32) {
    %c0_i32 = arith.constant 0 : i32
    %c0_i32_0 = arith.constant 0 : i32
    %c0_i32_1 = arith.constant 0 : i32
    return %arg0, %c0_i32, %c0_i32_0 : i32, i32, i32
  }
}

</mosaic_0001>

<llo_original>
// kernel: tpu_custom_call.1
$region0: #{tpu_custom_call.1}
  #allocation0 [shape = 'u32[]', space=smem, size = 0x4, offset = 0x4, fixed_abs, tag = 'smem constant byte address 0x4 - core index']
  #allocation1 [shape = 'u32[144,128]{1,0:T(1,128)}', space=vmem, size = 0x12000, scoped, tag = 'internal scratch']
  %s0 = inlined_call_operand.hbm [shape: f32[16,128], index: 0, kind: input, shape index: {}]
  %s1 = inlined_call_operand.hbm [shape: f32[16,128], index: 1, kind: input, shape index: {}]
  %s2 = inlined_call_operand.hbm [shape: f32[1,8,128], index: 2, kind: output, shape index: {0}]
  %s3 = inlined_call_operand.hbm [shape: f32[1,8,128], index: 3, kind: output, shape index: {1}]
  %4 = xla_tuple %s2, %s3
  %s5 = sld [smem:[#allocation0]]
  $region46: #{tpu_custom_call.1} parent=0
    _
  %s7 = ssub.s32 1, %s5
  %s8 = scalar_select 0, %s7, %s5
  $region1: #{tpu_custom_call.1} parent=0
    #allocation2 [shape = 'u8[8192]{0}', space=vmem, size = 0x2000, scoped, tag = 'input window, operand 0, single buffered']
    #allocation3 [shape = 's32[1]{0}', space=sflag, size = 0x4, scoped, tag = 'scoped memory for tpu_custom_call.1']
    #allocation4 [shape = 's32[1]{0}', space=sflag, size = 0x4, scoped, tag = 'scoped memory for tpu_custom_call.1']
    #allocation5 [shape = 'u8[8192]{0}', space=vmem, size = 0x2000, scoped, tag = 'input window, operand 1, single buffered']
    #allocation6 [shape = 's32[1]{0}', space=sflag, size = 0x4, scoped, tag = 'scoped memory for tpu_custom_call.1']
    #allocation7 [shape = 'u8[4096]{0}', space=vmem, size = 0x1000, scoped, tag = 'output window, operand 0, single buffered']
    #allocation8 [shape = 'u8[4096]{0}', space=vmem, size = 0x1000, scoped, tag = 'output window, operand 1, single buffered']
    #allocation9 [shape = 's32[1]{0}', space=sflag, size = 0x4, scoped, tag = 'scoped memory for tpu_custom_call.1']
    %9 = vsyncpa [#allocation3], 0
    %10 = vsyncpa [#allocation6], 0
    %11 = vsyncpa [#allocation4], 0
    %12 = vsyncpa [#allocation9], 0
    // Predicated region
    $region2: #{tpu_custom_call.1} parent=1 // pred_check
      _
    $region3: #{tpu_custom_call.1} parent=1 // pred_check_branch
      %14 = sbr.rel (0) target = $region5
    $region4: #{tpu_custom_call.1} parent=1 // pred_region
      %s15 = sadd.s32 0, 0
      %s16 = smul.u32 2, %s15
      %s18 = ssub.s32 256, 256
      %19 = vsyncadd [#allocation3], %s18
      %s20 = smul.addr %s16, 128
      %s21 = scalar_lea.hbm %s0, %s20
      %s22 = sshll.u32 [#allocation2], 4
      %s23 = int_to_ptr.vmem [resolvable:$true] %s22
      %28 = dma.hbm_to_vmem [thread:$0]  %s21, 256, %s23, [#allocation3], 128, 128, 8
    $region5: #{tpu_custom_call.1} parent=1 // pred_fallthru
      _
    // Predicated region
    $region6: #{tpu_custom_call.1} parent=1 // pred_check
      _
    $region7: #{tpu_custom_call.1} parent=1 // pred_check_branch
      %30 = sbr.rel (0) target = $region9
    $region8: #{tpu_custom_call.1} parent=1 // pred_region
      %s31 = sadd.s32 0, 0
      %s32 = smul.u32 2, %s31
      %s34 = ssub.s32 256, 256
      %35 = vsyncadd [#allocation6], %s34
      %s36 = smul.addr %s32, 128
      %s37 = scalar_lea.hbm %s1, %s36
      %s38 = sshll.u32 [#allocation5], 4
      %s39 = int_to_ptr.vmem [resolvable:$true] %s38
      %44 = dma.hbm_to_vmem [thread:$0]  %s37, 256, %s39, [#allocation6], 128, 128, 8
    $region9: #{tpu_custom_call.1} parent=1 // pred_fallthru
      _
    // Predicated region
    $region10: #{tpu_custom_call.1} parent=1 // pred_check
      _
    $region11: #{tpu_custom_call.1} parent=1 // pred_check_branch
      %46 = sbr.rel (0) target = $region13
    $region12: #{tpu_custom_call.1} parent=1 // pred_region
      %47 = dma.done [#allocation3], 256
    $region13: #{tpu_custom_call.1} parent=1 // pred_fallthru
      _
    // Predicated region
    $region14: #{tpu_custom_call.1} parent=1 // pred_check
      _
    $region15: #{tpu_custom_call.1} parent=1 // pred_check_branch
      %49 = sbr.rel (0) target = $region17
    $region16: #{tpu_custom_call.1} parent=1 // pred_region
      %50 = dma.done [#allocation6], 256
    $region17: #{tpu_custom_call.1} parent=1 // pred_fallthru
      _
    %s51 = sadd.s32 0, 0
    %s52 = smul.u32 2, %s51
    %s53 = sadd.s32 0, 0
    %s54 = smul.u32 2, %s53
    %p55 = scmp.eq.s32.totalorder 0, 0
    // Predicated region
    $region18: #{tpu_custom_call.1} parent=1 // pred_check
      %p56 = pneg %p55
    $region19: #{tpu_custom_call.1} parent=1 // pred_check_branch
      %58 = sbr.rel (%p56) target = $region21
    $region20: #{tpu_custom_call.1} parent=1 // pred_region
      %59 = vst [vmem:[#allocation7] sm:$0xff] 0.0
      %60 = vst [vmem:[#allocation8] sm:$0xff] 0.0
    $region21: #{tpu_custom_call.1} parent=1 // pred_fallthru
      _
    %s61 = sadd.s32 0, 0
    %s62 = smul.u32 %s61, 16
    %s63 = sadd.s32 %s62, 16
    %p64 = scmp.le.s32.totalorder %s63, 16
    // Predicated region
    $region22: #{tpu_custom_call.1} parent=1 // pred_check
      %p65 = pneg %p64
    $region23: #{tpu_custom_call.1} parent=1 // pred_check_branch
      %67 = sbr.rel (%p65) target = $region25
    $region24: #{tpu_custom_call.1} parent=1 // pred_region
      %v68 = vld [vmem:[#allocation2] sm:$0xff]
      %v69 = vld [vmem:[#allocation2 + $0x8] sm:$0xff]
      %v70 = vld [vmem:[#allocation5] sm:$0xff]
      %v71 = vld [vmem:[#allocation5 + $0x8] sm:$0xff]
      %v72 = vsub.f32 %v68, %v70
      %v73 = vsub.f32 %v69, %v71
      %v74 = vmul.f32 %v72, %v72
      %v75 = vmul.f32 %v73, %v73
      %v76 = vadd.f32 %v74, %v75
      %v77 = vadd.f32 %v76, 0.0
      %v78 = vand.u32 2147483647, %v72
      %v79 = vand.u32 2147483647, %v73
      %v80 = vadd.f32 %v78, %v79
      %v81 = vadd.f32 %v80, 0.0
      %v82 = vld [vmem:[#allocation7] sm:$0xff]
      %v83 = vadd.f32 %v82, %v77
      %84 = vst [vmem:[#allocation7] sm:$0xff] %v83
      %v85 = vld [vmem:[#allocation8] sm:$0xff]
      %v86 = vadd.f32 %v85, %v81
      %87 = vst [vmem:[#allocation8] sm:$0xff] %v86
    $region25: #{tpu_custom_call.1} parent=1 // pred_fallthru
      _
    %p88 = scmp.gt.s32.totalorder %s63, 16
    // Predicated region
    $region26: #{tpu_custom_call.1} parent=1 // pred_check
      %p89 = pneg %p88
    $region27: #{tpu_custom_call.1} parent=1 // pred_check_branch
      %91 = sbr.rel (%p89) target = $region29
    $region28: #{tpu_custom_call.1} parent=1 // pred_region
      %v92 = vlaneseq
      %v93 = vshrl.u32 %v92, 7
      %v94 = vadd.s32 %v93, 8
      %v95 = vld [vmem:[#allocation2] sm:$0xff]
      %v96 = vld [vmem:[#allocation2 + $0x8] sm:$0xff]
      %v97 = vld [vmem:[#allocation5] sm:$0xff]
      %v98 = vld [vmem:[#allocation5 + $0x8] sm:$0xff]
      %v99 = vsub.f32 %v95, %v97
      %v100 = vsub.f32 %v96, %v98
      %s101 = sadd.s32 %s62, 0
      %v102 = vstv %s101
      %v103 = vadd.s32 %v102, %v93
      %v104 = vadd.s32 %v102, %v94
      %vm105 = vcmp.lt.s32.totalorder %v103, 16
      %vm106 = vcmp.lt.s32.totalorder %v104, 16
      %v107 = vsel %vm105, %v99, 0.0
      %v108 = vsel %vm106, %v100, 0.0
      %v109 = vmul.f32 %v107, %v107
      %v110 = vmul.f32 %v108, %v108
      %v111 = vadd.f32 %v109, %v110
      %v112 = vadd.f32 %v111, 0.0
      %v113 = vand.u32 2147483647, %v107
      %v114 = vand.u32 2147483647, %v108
      %v115 = vadd.f32 %v113, %v114
      %v116 = vadd.f32 %v115, 0.0
      %v117 = vld [vmem:[#allocation7] sm:$0xff]
      %v118 = vadd.f32 %v117, %v112
      %119 = vst [vmem:[#allocation7] sm:$0xff] %v118
      %v120 = vld [vmem:[#allocation8] sm:$0xff]
      %v121 = vadd.f32 %v120, %v116
      %122 = vst [vmem:[#allocation8] sm:$0xff] %v121
    $region29: #{tpu_custom_call.1} parent=1 // pred_fallthru
      _
    // Predicated region
    $region30: #{tpu_custom_call.1} parent=1 // pred_check
      _
    $region31: #{tpu_custom_call.1} parent=1 // pred_check_branch
      %124 = sbr.rel (0) target = $region33
    $region32: #{tpu_custom_call.1} parent=1 // pred_region
      %s126 = ssub.s32 128, 128
      %127 = vsyncadd [#allocation4], %s126
      %s129 = sshll.u32 [#allocation7], 4
      %s130 = int_to_ptr.vmem [resolvable:$true] %s129
      %132 = dma.vmem_to_hbm [thread:$0]  %s130, 128, %s2, [#allocation4]
    $region33: #{tpu_custom_call.1} parent=1 // pred_fallthru
      _
    // Predicated region
    $region34: #{tpu_custom_call.1} parent=1 // pred_check
      _
    $region35: #{tpu_custom_call.1} parent=1 // pred_check_branch
      %134 = sbr.rel (0) target = $region37
    $region36: #{tpu_custom_call.1} parent=1 // pred_region
      %s136 = ssub.s32 128, 128
      %137 = vsyncadd [#allocation9], %s136
      %s139 = sshll.u32 [#allocation8], 4
      %s140 = int_to_ptr.vmem [resolvable:$true] %s139
      %142 = dma.vmem_to_hbm [thread:$0]  %s140, 128, %s3, [#allocation9]
    $region37: #{tpu_custom_call.1} parent=1 // pred_fallthru
      _
    // Predicated region
    $region38: #{tpu_custom_call.1} parent=1 // pred_check
      _
    $region39: #{tpu_custom_call.1} parent=1 // pred_check_branch
      %144 = sbr.rel (0) target = $region41
    $region40: #{tpu_custom_call.1} parent=1 // pred_region
      %145 = dma.done [#allocation4], 128
    $region41: #{tpu_custom_call.1} parent=1 // pred_fallthru
      _
    // Predicated region
    $region42: #{tpu_custom_call.1} parent=1 // pred_check
      _
    $region43: #{tpu_custom_call.1} parent=1 // pred_check_branch
      %147 = sbr.rel (0) target = $region45
    $region44: #{tpu_custom_call.1} parent=1 // pred_region
      %148 = dma.done [#allocation9], 128
    $region45: #{tpu_custom_call.1} parent=1 // pred_fallthru
      _
    %149 = vsyncpa [#allocation3], 1
    %150 = vsyncpa [#allocation6], 1
    %151 = vsyncpa [#allocation4], 1
    %152 = vsyncpa [#allocation9], 1

</llo_original>
